<compile_context>
chip_gen: v5e
topology: v5e:2x2
jax: 0.10.0
libtpu: 0.0.40
codegen_flags: <defaults>
</compile_context>

<pallas_src>
import functools

import jax
import jax.numpy as jnp
from jax.experimental import pallas as pl
from jax.experimental.pallas import tpu as pltpu

_LANE = 128
_SUBLANE = 8


def _round_up(x, m):
    return ((x + m - 1) // m) * m


def _cdiv(a, b):
    return (a + b - 1) // b


def _vmem_capacity_bytes():
    try:
        info = pltpu.get_tpu_info()
        cap = getattr(info, "vmem_capacity_bytes", None)
        if cap:
            return int(cap)
    except Exception:
        pass
    return 64 << 20  # conservative fallback: v7x per-TensorCore physical VMEM


# ---------------------------------------------------------------------------
# Kernels:  Y = (X - mean) @ W    (W = components_.T with zero-padded columns)
# ---------------------------------------------------------------------------

def _transform_kernel(x_ref, w_ref, mean_ref, o_ref, *, compute_dtype):
    # x_ref    : (tile_n, n_features)   f32
    # w_ref    : (n_features, c_pad)    compute_dtype (constant across grid)
    # mean_ref : (1, n_features)        f32           (constant across grid)
    # o_ref    : (tile_n, c_pad)        f32
    xc = (x_ref[...] - mean_ref[...]).astype(compute_dtype)
    o_ref[...] = jnp.dot(
        xc, w_ref[...], preferred_element_type=jnp.float32).astype(o_ref.dtype)


def _transform_kernel_ktiled(x_ref, w_ref, mean_ref, o_ref, acc_ref, *,
                             compute_dtype):
    # grid = (row_tiles, k_tiles); reduction axis last, f32 accumulator.
    k = pl.program_id(1)
    xc = (x_ref[...] - mean_ref[...]).astype(compute_dtype)
    part = jnp.dot(xc, w_ref[...], preferred_element_type=jnp.float32)

    @pl.when(k == 0)
    def _():
        acc_ref[...] = part

    @pl.when(k > 0)
    def _():
        acc_ref[...] += part

    @pl.when(k == pl.num_programs(1) - 1)
    def _():
        o_ref[...] = acc_ref[...].astype(o_ref.dtype)


# ---------------------------------------------------------------------------
# Tile planning
# ---------------------------------------------------------------------------

def _plan_tiles(n_samples, n_features, c_pad, w_bytes, budget, tile_n_user=None):
    """Pick (tile_n, tile_k, k_tiles, vmem_need) that fits the VMEM budget."""
    tile_ceiling = 2048 if budget >= (80 << 20) else 1024
    prob_cap = _round_up(max(n_samples, 1), _SUBLANE)

    # K candidates: whole-K first (resident, single-buffered W), then divisors
    # of n_features that are 128-multiples (no partial K block -> no garbage
    # enters the accumulator).
    k_candidates = [n_features]
    for tk in (2048, 1024, 512, 256, 128):
        if tk < n_features and n_features % tk == 0:
            k_candidates.append(tk)

    def need(tn, tk, kt):
        const_bufs = 1 if kt == 1 else 2          # W/mean single-buffered iff constant
        acc = 0 if kt == 1 else tn * c_pad * 4    # f32 accumulator scratch
        return (2 * tn * tk * 4                   # X blocks (f32, double-buffered)
                + const_bufs * tk * c_pad * w_bytes
                + const_bufs * tk * 4             # mean block(s)
                + 2 * tn * c_pad * 4              # output blocks (f32)
                + acc)

    best = None
    for tk in k_candidates:
        kt = 1 if tk >= n_features else n_features // tk
        if tile_n_user is not None:
            tn = max(_round_up(int(tile_n_user), _SUBLANE), _SUBLANE)
        else:
            tn = tile_ceiling
            while tn > _SUBLANE and need(tn, tk, kt) > budget:
                tn //= 2
            tn = max(min(tn, prob_cap), _SUBLANE)
        fits = need(tn, tk, kt) <= budget
        score = (fits, min(tn, prob_cap), -kt)
        if best is None or score > best[0]:
            best = (score, (tn, tk, kt))
    tn, tk, kt = best[1]

    # v7x has 2 TensorCores: ensure the "parallel" row axis has >= 2 steps so
    # the grid can shard across them (negligible cost on single-core chips).
    if tile_n_user is None and n_samples > _SUBLANE and _cdiv(n_samples, tn) < 2:
        tn = max(_SUBLANE, _round_up(_cdiv(n_samples, 2), _SUBLANE))

    return tn, tk, kt, need(tn, tk, kt)


# ---------------------------------------------------------------------------
# Wrapper
# ---------------------------------------------------------------------------

def make_ipca_transform(mean_, components_, *, use_bf16=True, tile_n=None):
    """Precompute fitted-state tensors once; returns transform(X) -> Y.

    Equivalent to IncrementalPCA.transform / forward:
        Y = (X - mean_) @ components_.T
    """
    components_ = jnp.asarray(components_, jnp.float32)
    mean_ = jnp.asarray(mean_, jnp.float32)
    n_components, n_features = components_.shape

    compute_dtype = jnp.bfloat16 if use_bf16 else jnp.float32
    w_bytes = jnp.dtype(compute_dtype).itemsize

    # Lane-dense output: pad component dim to a multiple of 128 (unmasked vst,
    # full MXU N tile).  TODO(synk): for tiny n_features where output writeback
    # dominates, a bf16 or un-padded masked output would halve that traffic.
    c_pad = _round_up(max(n_components, 1), _LANE)

    # Fitted-state prep done ONCE (not per transform call).
    W = jnp.zeros((n_features, c_pad), jnp.float32)
    W = W.at[:, :n_components].set(components_.T)
    W = W.astype(compute_dtype)
    mean2d = mean_.reshape(1, n_features)          # kept f32 for exact centering

    capacity = _vmem_capacity_bytes()
    budget = int(0.75 * capacity)                  # per-generation VMEM budget
    vmem_cap = min(capacity - (4 << 20), 128 << 20)  # never exceed physical

    def transform(X):
        X = jnp.asarray(X)
        if X.dtype != jnp.float32:
            X = X.astype(jnp.float32)
        n_samples = X.shape[0]
        assert X.shape[1] == n_features

        tn, tk, kt, vneed = _plan_tiles(
            n_samples, n_features, c_pad, w_bytes, budget, tile_n)
        row_tiles = _cdiv(n_samples, tn)
        vmem_limit = int(min(max(vneed + (8 << 20), 32 << 20), vmem_cap))

        cost = pl.CostEstimate(
            flops=2 * n_samples * n_features * c_pad,
            transcendentals=0,
            bytes_accessed=(n_samples * n_features * 4      # X read (f32)
                            + n_features * c_pad * w_bytes  # W
                            + n_features * 4                # mean
                            + n_samples * c_pad * 4),       # Y write
        )

        def run(single_buffer_consts):
            def const_spec(shape, index_map):
                # W / mean never change across the row grid: a single resident
                # buffer is enough (saves VMEM -> bigger row tiles).
                if single_buffer_consts:
                    return pl.BlockSpec(shape, index_map,
                                        pipeline_mode=pl.Buffered(1))
                return pl.BlockSpec(shape, index_map)

            if kt == 1:
                grid = (row_tiles,)
                in_specs = [
                    pl.BlockSpec((tn, n_features), lambda i: (i, 0)),
                    const_spec((n_features, c_pad), lambda i: (0, 0)),
                    const_spec((1, n_features), lambda i: (0, 0)),
                ]
                out_specs = pl.BlockSpec((tn, c_pad), lambda i: (i, 0))
                scratch = []
                semantics = ("parallel",)
                kern = functools.partial(_transform_kernel,
                                         compute_dtype=compute_dtype)
            else:
                grid = (row_tiles, kt)            # reduction axis last
                in_specs = [
                    pl.BlockSpec((tn, tk), lambda i, k: (i, k)),
                    pl.BlockSpec((tk, c_pad), lambda i, k: (k, 0)),
                    pl.BlockSpec((1, tk), lambda i, k: (0, k)),
                ]
                out_specs = pl.BlockSpec((tn, c_pad), lambda i, k: (i, 0))
                scratch = [pltpu.VMEM((tn, c_pad), jnp.float32)]
                semantics = ("parallel", "arbitrary")
                kern = functools.partial(_transform_kernel_ktiled,
                                         compute_dtype=compute_dtype)

            return pl.pallas_call(
                kern,
                out_shape=jax.ShapeDtypeStruct((n_samples, c_pad), jnp.float32),
                grid_spec=pltpu.PrefetchScalarGridSpec(
                    num_scalar_prefetch=0,
                    grid=grid,
                    in_specs=in_specs,
                    out_specs=out_specs,
                    scratch_shapes=scratch,
                ),
                compiler_params=pltpu.CompilerParams(
                    dimension_semantics=semantics,
                    vmem_limit_bytes=vmem_limit,
                ),
                cost_estimate=cost,
            )(X, W, mean2d)

        try:
            Y = run(single_buffer_consts=True)
        except Exception:
            # pipeline_mode / pl.Buffered(1) not supported on this jax build:
            # fall back to default double-buffering (identical results).
            Y = run(single_buffer_consts=False)

        # TODO(synk): consumers that tolerate the lane-padded (c_pad) layout
        # should skip this slice to avoid one extra HBM pass over Y.
        return Y[:, :n_components]

    return transform


def incremental_pca_transform(X, mean_, components_, *, use_bf16=True,
                              tile_n=None):
    """One-shot convenience wrapper (prefer make_ipca_transform for reuse)."""
    return make_ipca_transform(mean_, components_, use_bf16=use_bf16,
                               tile_n=tile_n)(X)


if __name__ == "__main__":
    # Small shapes consistent with the module's forward.
    n_samples, n_features, n_components = 20, 32, 8

    key = jax.random.PRNGKey(0)
    kx, km, kc = jax.random.split(key, 3)

    X = jax.random.normal(kx, (n_samples, n_features), dtype=jnp.float32)

    # Deterministic synthetic "fitted" state (mean_ and components_ buffers).
    mean_ = jax.random.normal(km, (n_features,), dtype=jnp.float32) * 0.1
    components_ = jax.random.normal(
        kc, (n_components, n_features), dtype=jnp.float32)
    components_ = components_ / jnp.linalg.norm(
        components_, axis=1, keepdims=True)

    # TODO(synk): fit()/partial_fit() (incremental mean/var + torch.linalg.svd
    # + svd_flip) and the DataLoader batching loop have no clean Pallas
    # equivalent; only transform() — the module's forward — is a kernel.

    Y_ref = (X - mean_[None, :]) @ components_.T

    # f32 path (tight tolerance); fitted-state prep reused across calls.
    tf32 = make_ipca_transform(mean_, components_, use_bf16=False)
    Y32 = jax.block_until_ready(tf32(X))
    assert Y32.shape == (n_samples, n_components)
    assert jnp.allclose(Y32, Y_ref, atol=1e-4, rtol=1e-4)

    # bf16-matmul / f32-accumulate fast path (centering done in f32 in-kernel).
    tbf = make_ipca_transform(mean_, components_, use_bf16=True)
    Ybf = jax.block_until_ready(tbf(X))
    assert Ybf.shape == (n_samples, n_components)
    assert jnp.allclose(Ybf, Y_ref, atol=5e-2, rtol=5e-2)

    print("KERNEL_OK")
</pallas_src>

<mosaic_0001>
module attributes {stable_mosaic.version = 11 : i64} {
  func.func @_transform_kernel(%arg0: i32, %arg1: memref<16x32xf32, #tpu.memory_space<vmem>>, %arg2: memref<32x128xf32, #tpu.memory_space<vmem>>, %arg3: memref<1x32xf32, #tpu.memory_space<vmem>>, %arg4: memref<16x128xf32, #tpu.memory_space<vmem>>) attributes {dimension_semantics = [#tpu.dimension_semantics<parallel>], iteration_bounds = array<i64: 2>, scalar_prefetch = 0 : i64, scratch_operands = 0 : i64, tpu.core_type = #tpu.core_type<tc>, window_params = [{transform_indices = @transform_0, window_bounds = array<i64: 16, 32>}, {pipeline_mode = #tpu.pipeline_mode<synchronous>, transform_indices = @transform_1, window_bounds = array<i64: 32, 128>}, {pipeline_mode = #tpu.pipeline_mode<synchronous>, transform_indices = @transform_2, window_bounds = array<i64: 1, 32>}, {transform_indices = @transform_3, window_bounds = array<i64: 16, 128>}]} {
    %c0 = arith.constant 0 : index
    %c0_0 = arith.constant 0 : index
    %0 = vector.load %arg1[%c0, %c0_0] : memref<16x32xf32, #tpu.memory_space<vmem>>, vector<16x32xf32>
    %c0_1 = arith.constant 0 : index
    %c0_2 = arith.constant 0 : index
    %1 = vector.load %arg3[%c0_1, %c0_2] : memref<1x32xf32, #tpu.memory_space<vmem>>, vector<1x32xf32>
    %2 = vector.broadcast %1 : vector<1x32xf32> to vector<16x32xf32>
    %3 = arith.subf %0, %2 : vector<16x32xf32>
    %c0_3 = arith.constant 0 : index
    %c0_4 = arith.constant 0 : index
    %4 = vector.load %arg2[%c0_3, %c0_4] : memref<32x128xf32, #tpu.memory_space<vmem>>, vector<32x128xf32>
    %cst = arith.constant dense<0.000000e+00> : vector<16x128xf32>
    %5 = tpu.matmul %3, %4, %cst {dimension_numbers = #tpu.dot_dimension_numbers<[1], [0], [0], [1], [0, 0, 1, 1], [], []>} : vector<16x32xf32>, vector<32x128xf32>, vector<16x128xf32> -> vector<16x128xf32>
    %c0_5 = arith.constant 0 : index
    %c0_6 = arith.constant 0 : index
    %6 = vector.load %arg4[%c0_5, %c0_6] : memref<16x128xf32, #tpu.memory_space<vmem>>, vector<16x128xf32>
    tpu.vector_store %arg4[%c0_5, %c0_6], %5 {strides = array<i32>} : memref<16x128xf32, #tpu.memory_space<vmem>>, vector<16x128xf32>,
    return
  }
  func.func @transform_0(%arg0: i32) -> (i32, i32) {
    %c0_i32 = arith.constant 0 : i32
    %c0_i32_0 = arith.constant 0 : i32
    return %arg0, %c0_i32 : i32, i32
  }
  func.func @transform_1(%arg0: i32) -> (i32, i32) {
    %c0_i32 = arith.constant 0 : i32
    %c0_i32_0 = arith.constant 0 : i32
    %c0_i32_1 = arith.constant 0 : i32
    return %c0_i32, %c0_i32_0 : i32, i32
  }
  func.func @transform_2(%arg0: i32) -> (i32, i32) {
    %c0_i32 = arith.constant 0 : i32
    %c0_i32_0 = arith.constant 0 : i32
    %c0_i32_1 = arith.constant 0 : i32
    return %c0_i32, %c0_i32_0 : i32, i32
  }
  func.func @transform_3(%arg0: i32) -> (i32, i32) {
    %c0_i32 = arith.constant 0 : i32
    %c0_i32_0 = arith.constant 0 : i32
    return %arg0, %c0_i32 : i32, i32
  }
}

module attributes {stable_mosaic.version = 11 : i64} {
  func.func @_transform_kernel(%arg0: i32, %arg1: memref<16x32xf32, #tpu.memory_space<vmem>>, %arg2: memref<32x128xf32, #tpu.memory_space<vmem>>, %arg3: memref<1x32xf32, #tpu.memory_space<vmem>>, %arg4: memref<16x128xf32, #tpu.memory_space<vmem>>) attributes {dimension_semantics = [#tpu.dimension_semantics<parallel>], iteration_bounds = array<i64: 2>, scalar_prefetch = 0 : i64, scratch_operands = 0 : i64, tpu.core_type = #tpu.core_type<tc>, window_params = [{transform_indices = @transform_0, window_bounds = array<i64: 16, 32>}, {pipeline_mode = #tpu.pipeline_mode<synchronous>, transform_indices = @transform_1, window_bounds = array<i64: 32, 128>}, {pipeline_mode = #tpu.pipeline_mode<synchronous>, transform_indices = @transform_2, window_bounds = array<i64: 1, 32>}, {transform_indices = @transform_3, window_bounds = array<i64: 16, 128>}]} {
    %c0 = arith.constant 0 : index
    %c0_0 = arith.constant 0 : index
    %0 = vector.load %arg1[%c0, %c0_0] : memref<16x32xf32, #tpu.memory_space<vmem>>, vector<16x32xf32>
    %c0_1 = arith.constant 0 : index
    %c0_2 = arith.constant 0 : index
    %1 = vector.load %arg3[%c0_1, %c0_2] : memref<1x32xf32, #tpu.memory_space<vmem>>, vector<1x32xf32>
    %2 = vector.broadcast %1 : vector<1x32xf32> to vector<16x32xf32>
    %3 = arith.subf %0, %2 : vector<16x32xf32>
    %c0_3 = arith.constant 0 : index
    %c0_4 = arith.constant 0 : index
    %4 = vector.load %arg2[%c0_3, %c0_4] : memref<32x128xf32, #tpu.memory_space<vmem>>, vector<32x128xf32>
    %cst = arith.constant dense<0.000000e+00> : vector<16x128xf32>
    %5 = tpu.matmul %3, %4, %cst {dimension_numbers = #tpu.dot_dimension_numbers<[1], [0], [0], [1], [0, 0, 1, 1], [], []>} : vector<16x32xf32>, vector<32x128xf32>, vector<16x128xf32> -> vector<16x128xf32>
    %c0_5 = arith.constant 0 : index
    %c0_6 = arith.constant 0 : index
    %6 = vector.load %arg4[%c0_5, %c0_6] : memref<16x128xf32, #tpu.memory_space<vmem>>, vector<16x128xf32>
    tpu.vector_store %arg4[%c0_5, %c0_6], %5 {strides = array<i32>} : memref<16x128xf32, #tpu.memory_space<vmem>>, vector<16x128xf32>,
    return
  }
  func.func @transform_0(%arg0: i32) -> (i32, i32) {
    %c0_i32 = arith.constant 0 : i32
    %c0_i32_0 = arith.constant 0 : i32
    return %arg0, %c0_i32 : i32, i32
  }
  func.func @transform_1(%arg0: i32) -> (i32, i32) {
    %c0_i32 = arith.constant 0 : i32
    %c0_i32_0 = arith.constant 0 : i32
    %c0_i32_1 = arith.constant 0 : i32
    return %c0_i32, %c0_i32_0 : i32, i32
  }
  func.func @transform_2(%arg0: i32) -> (i32, i32) {
    %c0_i32 = arith.constant 0 : i32
    %c0_i32_0 = arith.constant 0 : i32
    %c0_i32_1 = arith.constant 0 : i32
    return %c0_i32, %c0_i32_0 : i32, i32
  }
  func.func @transform_3(%arg0: i32) -> (i32, i32) {
    %c0_i32 = arith.constant 0 : i32
    %c0_i32_0 = arith.constant 0 : i32
    return %arg0, %c0_i32 : i32, i32
  }
}

</mosaic_0001>

<llo_original>
// kernel: tpu_custom_call.1
$region0: #{tpu_custom_call.1}
  #allocation0 [shape = 'u32[]', space=smem, size = 0x4, offset = 0x4, fixed_abs, tag = 'smem constant byte address 0x4 - core index']
  #allocation1 [shape = 'u32[72,128]{1,0:T(1,128)}', space=vmem, size = 0x9000, scoped, tag = 'internal scratch']
  %s0 = inlined_call_operand.hbm [shape: f32[20,32], index: 0, kind: input, shape index: {}]
  %s1 = inlined_call_operand.hbm [shape: f32[32,128], index: 1, kind: input, shape index: {}]
  %s2 = inlined_call_operand.vmem [shape: f32[1,32], index: 2, kind: input, shape index: {}]
  %s3 = inlined_call_operand.hbm [shape: f32[20,128], index: 3, kind: output, shape index: {}]
  %s4 = sld [smem:[#allocation0]]
  $region53: #{tpu_custom_call.1} parent=0
    _
  %s6 = ssub.s32 1, %s4
  %s7 = scalar_select 0, %s6, %s4
  $region1: #{tpu_custom_call.1} parent=0
    #allocation2 [shape = 'u8[16384]{0}', space=vmem, size = 0x4000, scoped, tag = 'input window, operand 0']
    #allocation3 [shape = 's32[2]{0}', space=sflag, size = 0x8, scoped, tag = 'scoped memory for tpu_custom_call.1']
    #allocation4 [shape = 's32[2]{0}', space=sflag, size = 0x8, scoped, tag = 'scoped memory for tpu_custom_call.1']
    #allocation5 [shape = 'u8[16384]{0}', space=vmem, size = 0x4000, scoped, tag = 'input window, operand 1, single buffered']
    #allocation6 [shape = 's32[1]{0}', space=sflag, size = 0x4, scoped, tag = 'scoped memory for tpu_custom_call.1']
    #allocation7 [shape = 'u8[16384]{0}', space=vmem, size = 0x4000, scoped, tag = 'output window, operand 0']
    %8 = vsyncpa [#allocation3], 0
    %s9 = scalar_lea.sflag [#allocation3], 1
    %10 = vsyncpa %s9, 0
    %11 = vsyncpa [#allocation6], 0
    %12 = vsyncpa [#allocation4], 0
    %s13 = scalar_lea.sflag [#allocation4], 1
    %14 = vsyncpa %s13, 0
    loop: start=0, step=1, limit=4
    $region2: #{tpu_custom_call.1} parent=1 // loop_pre_header
      _
    $region3: #{tpu_custom_call.1} parent=1 // loop_header
      %s16 = sphi 0, %s20
      %p17 = scmp.ge.s32.totalorder %s16, 4
      %s26 = sphi 0, %s28
      %s29 = sphi 0, %s26
      %s30 = sphi 0, %s29
      %s46 = sphi 0, %s30
      %s50 = sphi 0, %s50
      %s52 = sphi 0, %s50
      %s53 = sphi 0, %s52
      %s67 = sphi 0, %s53
      %s71 = sphi 0, %s71
      %s73 = sphi 0, %s71
      %s74 = sphi 0, %s73
      %s88 = sphi 0, %s74
      %s94 = sphi 0, %s96
      %s97 = sphi 0, %s94
      %s98 = sphi 0, %s97
      %s114 = sphi 0, %s98
    $region4: #{tpu_custom_call.1} parent=1 // loop_header_branch
      %19 = sbr.rel (%p17) target = $region8
    $region5: #{tpu_custom_call.1} parent=1 // loop_body
      %s21 = ssub.s32 %s16, 1
      %s22 = ssub.s32 %s16, 2
      %s23 = sadd.s32 %s16, 1
      %s24 = ssub.s32 %s16, %s23
      %p25 = scmp.eq.s32.totalorder %s24, 0
      %s27 = sadd.s32 %s26, 1
      %s28 = scalar_select %p25, %s26, %s27
      %p31 = pneg %p25
      %p32 = scmp.eq.s32.totalorder %s16, 1
      %p33 = por %p31, %p32
      %p34 = scmp.ne.s32.totalorder %s26, %s29
      %p35 = scmp.eq.s32.totalorder %s16, 0
      %p36 = por %p34, %p35
      %p37 = scmp.ne.s32.totalorder %s26, %s29
      %p38 = scmp.eq.s32.totalorder %s21, 1
      %p39 = por %p37, %p38
      %p40 = scmp.ne.s32.totalorder %s29, %s30
      %p41 = scmp.eq.s32.totalorder %s21, 0
      %p42 = por %p40, %p41
      %p43 = scmp.ne.s32.totalorder %s29, %s30
      %p44 = scmp.eq.s32.totalorder %s22, 1
      %p45 = por %p43, %p44
      %p47 = scmp.ne.s32.totalorder %s30, %s46
      %p48 = scmp.eq.s32.totalorder %s22, 0
      %p49 = por %p47, %p48
      %s51 = sadd.s32 %s50, 1
      %p54 = scmp.eq.s32.totalorder %s16, 1
      %p55 = scmp.ne.s32.totalorder %s50, %s52
      %p56 = scmp.eq.s32.totalorder %s16, 0
      %p57 = por %p55, %p56
      %p58 = scmp.ne.s32.totalorder %s50, %s52
      %p59 = scmp.eq.s32.totalorder %s21, 1
      %p60 = por %p58, %p59
      %p61 = scmp.ne.s32.totalorder %s52, %s53
      %p62 = scmp.eq.s32.totalorder %s21, 0
      %p63 = por %p61, %p62
      %p64 = scmp.ne.s32.totalorder %s52, %s53
      %p65 = scmp.eq.s32.totalorder %s22, 1
      %p66 = por %p64, %p65
      %p68 = scmp.ne.s32.totalorder %s53, %s67
      %p69 = scmp.eq.s32.totalorder %s22, 0
      %p70 = por %p68, %p69
      %s72 = sadd.s32 %s71, 1
      %p75 = scmp.eq.s32.totalorder %s16, 1
      %p76 = scmp.ne.s32.totalorder %s71, %s73
      %p77 = scmp.eq.s32.totalorder %s16, 0
      %p78 = por %p76, %p77
      %p79 = scmp.ne.s32.totalorder %s71, %s73
      %p80 = scmp.eq.s32.totalorder %s21, 1
      %p81 = por %p79, %p80
      %p82 = scmp.ne.s32.totalorder %s73, %s74
      %p83 = scmp.eq.s32.totalorder %s21, 0
      %p84 = por %p82, %p83
      %p85 = scmp.ne.s32.totalorder %s73, %s74
      %p86 = scmp.eq.s32.totalorder %s22, 1
      %p87 = por %p85, %p86
      %p89 = scmp.ne.s32.totalorder %s74, %s88
      %p90 = scmp.eq.s32.totalorder %s22, 0
      %p91 = por %p89, %p90
      %s92 = ssub.s32 %s16, %s23
      %p93 = scmp.eq.s32.totalorder %s92, 0
      %s95 = sadd.s32 %s94, 1
      %s96 = scalar_select %p93, %s94, %s95
      %p99 = pneg %p93
      %p100 = scmp.eq.s32.totalorder %s16, 1
      %p101 = por %p99, %p100
      %p102 = scmp.ne.s32.totalorder %s94, %s97
      %p103 = scmp.eq.s32.totalorder %s16, 0
      %p104 = por %p102, %p103
      %p105 = scmp.ne.s32.totalorder %s94, %s97
      %p106 = scmp.eq.s32.totalorder %s21, 1
      %p107 = por %p105, %p106
      %p108 = scmp.ne.s32.totalorder %s97, %s98
      %p109 = scmp.eq.s32.totalorder %s21, 0
      %p110 = por %p108, %p109
      %p111 = scmp.ne.s32.totalorder %s97, %s98
      %p112 = scmp.eq.s32.totalorder %s22, 1
      %p113 = por %p111, %p112
      %p115 = scmp.ne.s32.totalorder %s98, %s114
      %p116 = scmp.eq.s32.totalorder %s22, 0
      %p117 = por %p115, %p116
      %p118 = scmp.le.s32.totalorder 1, %s16
      %p119 = scmp.lt.s32.totalorder %s16, 3
      %p120 = pnand %p118, %p119
      %p121 = pneg %p120
      // Predicated region
      $region9: #{tpu_custom_call.1} parent=5 // pred_check
        _
      $region10: #{tpu_custom_call.1} parent=5 // pred_check_branch
        %123 = sbr.rel (%p120) target = $region12
      $region11: #{tpu_custom_call.1} parent=5 // pred_region
        %s124 = ssub.s32 %s16, 1
        // Predicated region
        $region13: #{tpu_custom_call.1} parent=11 // pred_check
          %p125 = pneg %p63
        $region14: #{tpu_custom_call.1} parent=11 // pred_check_branch
          %127 = sbr.rel (%p125) target = $region16
        $region15: #{tpu_custom_call.1} parent=11 // pred_region
          %129 = vsyncadd [#allocation6], 0
          %s130 = sshll.u32 %s1, 4
          %s131 = int_to_ptr.hbm [resolvable:$true] %s130
          %s132 = sshll.u32 [#allocation5], 4
          %s133 = int_to_ptr.vmem [resolvable:$true] %s132
          %138 = dma.hbm_to_vmem [thread:$0]  %s131, 512, %s133, [#allocation6], 128, 128, 8
        $region16: #{tpu_custom_call.1} parent=11 // pred_fallthru
          _
        // Predicated region
        $region17: #{tpu_custom_call.1} parent=11 // pred_check
          %p139 = pneg %p84
        $region18: #{tpu_custom_call.1} parent=11 // pred_check_branch
          %141 = sbr.rel (%p139) target = $region20
        $region19: #{tpu_custom_call.1} parent=11 // pred_region
          _
        $region20: #{tpu_custom_call.1} parent=11 // pred_fallthru
          _
      $region12: #{tpu_custom_call.1} parent=5 // pred_fallthru
        _
      %p142 = scmp.lt.s32.totalorder %s16, 2
      // Predicated region
      $region21: #{tpu_custom_call.1} parent=5 // pred_check
        %p143 = pneg %p142
      $region22: #{tpu_custom_call.1} parent=5 // pred_check_branch
        %145 = sbr.rel (%p143) target = $region24
      $region23: #{tpu_custom_call.1} parent=5 // pred_region
        // Predicated region
        $region25: #{tpu_custom_call.1} parent=23 // pred_check
          %p146 = pneg %p36
        $region26: #{tpu_custom_call.1} parent=23 // pred_check_branch
          %148 = sbr.rel (%p146) target = $region28
        $region27: #{tpu_custom_call.1} parent=23 // pred_region
          %s149 = sand.u32 %s26, 1
          %s150 = scalar_lea.sflag [#allocation3], %s149
          %s151 = sand.u32 %s26, 1
          %s152 = smul.addr %s151, 16
          %s153 = scalar_lea.vmem [#allocation2], %s152
          %s154 = smul.u32 2, %s16
          %s155 = ssub.s32 3, %s154
          %p156 = scmp.lt.s32.totalorder %s155, 2
          %s157 = scalar_select %p156, %s155, 2
          %s158 = smul.u32 8, %s157
          %s159 = ssub.s32 16, %s158
          %s160 = sshll.u32 %s159, 4
          %161 = vsyncadd %s150, %s160
          %p162 = scmp.ne.s32.totalorder 0, %s158
          %s163 = smul.addr %s154, 8
          %s164 = scalar_lea.hbm %s0, %s163
          %s165 = smul.u32 8, %s157
          %s166 = sshll.u32 %s164, 4
          %s167 = int_to_ptr.hbm [resolvable:$true] %s166
          %s168 = sshll.u32 %s153, 4
          %s169 = int_to_ptr.vmem [resolvable:$true] %s168
          %s170 = sshll.u32 %s165, 4
          %174 = dma.hbm_to_vmem [thread:$0]  (%p162), %s167, %s170, %s169, %s150, 128, 128, 8
        $region28: #{tpu_custom_call.1} parent=23 // pred_fallthru
          _
      $region24: #{tpu_custom_call.1} parent=5 // pred_fallthru
        _
      %p175 = scmp.le.s32.totalorder 1, %s16
      %p176 = scmp.lt.s32.totalorder %s16, 3
      %p177 = pnand %p175, %p176
      %p178 = pneg %p177
      // Predicated region
      $region29: #{tpu_custom_call.1} parent=5 // pred_check
        _
      $region30: #{tpu_custom_call.1} parent=5 // pred_check_branch
        %180 = sbr.rel (%p177) target = $region32
      $region31: #{tpu_custom_call.1} parent=5 // pred_region
        %s181 = ssub.s32 %s16, 1
        %s182 = sand.u32 %s29, 1
        %s183 = scalar_lea.sflag [#allocation3], %s182
        %s184 = sand.u32 %s29, 1
        %s185 = smul.addr %s184, 16
        %s186 = scalar_lea.vmem [#allocation2], %s185
        // Predicated region
        $region33: #{tpu_custom_call.1} parent=31 // pred_check
          %p187 = pneg %p42
        $region34: #{tpu_custom_call.1} parent=31 // pred_check_branch
          %189 = sbr.rel (%p187) target = $region36
        $region35: #{tpu_custom_call.1} parent=31 // pred_region
          %191 = dma.done %s183, 256
        $region36: #{tpu_custom_call.1} parent=31 // pred_fallthru
          _
        // Predicated region
        $region37: #{tpu_custom_call.1} parent=31 // pred_check
          %p192 = pneg %p63
        $region38: #{tpu_custom_call.1} parent=31 // pred_check_branch
          %194 = sbr.rel (%p192) target = $region40
        $region39: #{tpu_custom_call.1} parent=31 // pred_region
          %196 = dma.done [#allocation6], 512
        $region40: #{tpu_custom_call.1} parent=31 // pred_fallthru
          _
        %s197 = sand.u32 %s29, 1
        %s198 = scalar_lea.sflag [#allocation3], %s197
        %s199 = sand.u32 %s29, 1
        %s200 = smul.addr %s199, 16
        %s201 = scalar_lea.vmem [#allocation2], %s200
        %p202 = pneg %p42
        %p203 = pneg %p39
        %p204 = pneg %p63
        %p205 = pneg %p60
        %p206 = pneg %p84
        %p207 = pneg %p81
        %p208 = pneg %p110
        %p209 = pneg %p107
        %s210 = sand.u32 %s97, 1
        %s211 = scalar_lea.sflag [#allocation4], %s210
        %s212 = sand.u32 %s97, 1
        %s213 = smul.addr %s212, 16
        %s214 = scalar_lea.vmem [#allocation7], %s213
        %s215 = smul.u32 2, %s21
        %s216 = ssub.s32 3, %s215
        %p217 = scmp.lt.s32.totalorder %s216, 2
        %s218 = scalar_select %p217, %s216, 2
        %s219 = smul.u32 8, %s218
        %s220 = smul.u32 2, %s21
        %s221 = ssub.s32 3, %s220
        %p222 = scmp.lt.s32.totalorder %s221, 2
        %s223 = scalar_select %p222, %s221, 2
        %s224 = smul.u32 8, %s223
        %v225 = vld [vmem:[%s186] sm:$0xff]
        %v226 = vld [vmem:[%s186 + $0x8] sm:$0xff]
        %v227 = vld [vmem:[%s2] sm:$0x1]
        %v229 = vperm.slane %v227, 0
        %v231 = vsub.f32 %v225, %v229
        %v232 = vsub.f32 %v226, %v229
        %v233 = vld [vmem:[#allocation5] sm:$0xff]
        %v234 = vld [vmem:[#allocation5 + $0x8] sm:$0xff]
        %v235 = vld [vmem:[#allocation5 + $0x10] sm:$0xff]
        %v236 = vld [vmem:[#allocation5 + $0x18] sm:$0xff]
        %vm237 = vcmask 261120
        %v239 = vsel %vm237, %v231, 0
        %v242 = vsel %vm237, %v232, 0
        %244 = vmatpush.msra.mxu0 0.0
        %245 = vmatpush.msra.mxu0 0.0
        %246 = vmatpush.msra.mxu0 0.0
        %247 = vmatpush.msra.mxu0 0.0
        %248 = vmatpush.msra.mxu0 0.0
        %249 = vmatpush.msra.mxu0 0.0
        %250 = vmatpush.msra.mxu0 0.0
        %251 = vmatpush.msra.mxu0 0.0
        %252 = vmatpush.msra.mxu0 0.0
        %253 = vmatpush.msra.mxu0 0.0
        %254 = vmatpush.msra.mxu0 0.0
        %255 = vmatpush.msra.mxu0 0.0
        %256 = vmatpush.msra.mxu0 %v236
        %257 = vmatpush.msra.mxu0 %v235
        %258 = vmatpush.msra.mxu0 %v234
        %259 = vmatpush.msra.mxu0 %v233
        %260 = vmatmul.f32.gmra.mxu0 %v239
        %v261 = vpop.f32.mrf.mxu0
        %v262 = vadd.f32 0.0, %v261
        %263 = vmatmul.f32.gmra.mxu0 %v242
        %v264 = vpop.f32.mrf.mxu0
        %v265 = vadd.f32 0.0, %v264
        %266 = vdwg.mxu0
        %267 = vst [vmem:[%s214] sm:$0xff] %v262
        %268 = vst [vmem:[%s214 + $0x8] sm:$0xff] %v265
        %s269 = sand.u32 %s97, 1
        %s270 = scalar_lea.sflag [#allocation4], %s269
        %s271 = sand.u32 %s97, 1
        %s272 = smul.addr %s271, 16
        %s273 = scalar_lea.vmem [#allocation7], %s272
        // Predicated region
        $region41: #{tpu_custom_call.1} parent=31 // pred_check
          %p274 = pneg %p107
        $region42: #{tpu_custom_call.1} parent=31 // pred_check_branch
          %276 = sbr.rel (%p274) target = $region44
        $region43: #{tpu_custom_call.1} parent=31 // pred_region
          %s277 = smul.u32 2, %s21
          %s278 = ssub.s32 3, %s277
          %p279 = scmp.lt.s32.totalorder %s278, 2
          %s280 = scalar_select %p279, %s278, 2
          %s281 = smul.u32 8, %s280
          %s282 = ssub.s32 16, %s281
          %s283 = sshll.u32 %s282, 4
          %284 = vsyncadd %s270, %s283
          %p285 = scmp.ne.s32.totalorder 0, %s281
          %s286 = smul.addr %s277, 8
          %s287 = scalar_lea.hbm %s3, %s286
          %s288 = smul.u32 8, %s280
          %s289 = sshll.u32 %s273, 4
          %s290 = int_to_ptr.vmem [resolvable:$true] %s289
          %s291 = sshll.u32 %s287, 4
          %s292 = int_to_ptr.hbm [resolvable:$true] %s291
          %s293 = sshll.u32 %s288, 4
          %297 = dma.vmem_to_hbm [thread:$0]  (%p285), %s290, %s293, %s292, %s270, 128, 128, 8
        $region44: #{tpu_custom_call.1} parent=31 // pred_fallthru
          _
      $region32: #{tpu_custom_call.1} parent=5 // pred_fallthru
        _
      %p298 = scmp.le.s32.totalorder 2, %s16
      // Predicated region
      $region45: #{tpu_custom_call.1} parent=5 // pred_check
        %p299 = pneg %p298
      $region46: #{tpu_custom_call.1} parent=5 // pred_check_branch
        %301 = sbr.rel (%p299) target = $region48
      $region47: #{tpu_custom_call.1} parent=5 // pred_region
        %s302 = ssub.s32 %s16, 2
        // Predicated region
        $region49: #{tpu_custom_call.1} parent=47 // pred_check
          %p303 = pneg %p113
        $region50: #{tpu_custom_call.1} parent=47 // pred_check_branch
          %305 = sbr.rel (%p303) target = $region52
        $region51: #{tpu_custom_call.1} parent=47 // pred_region
          %s306 = sand.u32 %s98, 1
          %s307 = scalar_lea.sflag [#allocation4], %s306
          %s308 = sand.u32 %s98, 1
          %s309 = smul.addr %s308, 16
          %s310 = scalar_lea.vmem [#allocation7], %s309
          %312 = dma.done %s307, 256
        $region52: #{tpu_custom_call.1} parent=47 // pred_fallthru
          _
      $region48: #{tpu_custom_call.1} parent=5 // pred_fallthru
        _
    $region6: #{tpu_custom_call.1} parent=1 // loop_footer
      %s20 = sadd.s32 1, %s16
    $region7: #{tpu_custom_call.1} parent=1 // loop_footer_branch
      %15 = sbr.rel target = $region3
    $region8: #{tpu_custom_call.1} parent=1 // loop_exit
      _
    %313 = vsyncpa [#allocation3], 1
    %s314 = scalar_lea.sflag [#allocation3], 1
    %315 = vsyncpa %s314, 1
    %316 = vsyncpa [#allocation6], 1
    %317 = vsyncpa [#allocation4], 1
    %s318 = scalar_lea.sflag [#allocation4], 1
    %319 = vsyncpa %s318, 1

// kernel: tpu_custom_call.1
$region0: #{tpu_custom_call.1}
  #allocation0 [shape = 'u32[]', space=smem, size = 0x4, offset = 0x4, fixed_abs, tag = 'smem constant byte address 0x4 - core index']
  #allocation1 [shape = 'u32[72,128]{1,0:T(1,128)}', space=vmem, size = 0x9000, scoped, tag = 'internal scratch']
  %s0 = inlined_call_operand.hbm [shape: f32[20,32], index: 0, kind: input, shape index: {}]
  %s1 = inlined_call_operand.hbm [shape: f32[32,128], index: 1, kind: input, shape index: {}]
  %s2 = inlined_call_operand.vmem [shape: f32[1,32], index: 2, kind: input, shape index: {}]
  %s3 = inlined_call_operand.hbm [shape: f32[20,128], index: 3, kind: output, shape index: {}]
  %s4 = sld [smem:[#allocation0]]
  $region53: #{tpu_custom_call.1} parent=0
    _
  %s6 = ssub.s32 1, %s4
  %s7 = scalar_select 0, %s6, %s4
  $region1: #{tpu_custom_call.1} parent=0
    #allocation2 [shape = 'u8[16384]{0}', space=vmem, size = 0x4000, scoped, tag = 'input window, operand 0']
    #allocation3 [shape = 's32[2]{0}', space=sflag, size = 0x8, scoped, tag = 'scoped memory for tpu_custom_call.1']
    #allocation4 [shape = 's32[2]{0}', space=sflag, size = 0x8, scoped, tag = 'scoped memory for tpu_custom_call.1']
    #allocation5 [shape = 'u8[16384]{0}', space=vmem, size = 0x4000, scoped, tag = 'input window, operand 1, single buffered']
    #allocation6 [shape = 's32[1]{0}', space=sflag, size = 0x4, scoped, tag = 'scoped memory for tpu_custom_call.1']
    #allocation7 [shape = 'u8[16384]{0}', space=vmem, size = 0x4000, scoped, tag = 'output window, operand 0']
    %8 = vsyncpa [#allocation3], 0
    %s9 = scalar_lea.sflag [#allocation3], 1
    %10 = vsyncpa %s9, 0
    %11 = vsyncpa [#allocation6], 0
    %12 = vsyncpa [#allocation4], 0
    %s13 = scalar_lea.sflag [#allocation4], 1
    %14 = vsyncpa %s13, 0
    loop: start=0, step=1, limit=4
    $region2: #{tpu_custom_call.1} parent=1 // loop_pre_header
      _
    $region3: #{tpu_custom_call.1} parent=1 // loop_header
      %s16 = sphi 0, %s20
      %p17 = scmp.ge.s32.totalorder %s16, 4
      %s26 = sphi 0, %s28
      %s29 = sphi 0, %s26
      %s30 = sphi 0, %s29
      %s46 = sphi 0, %s30
      %s50 = sphi 0, %s50
      %s52 = sphi 0, %s50
      %s53 = sphi 0, %s52
      %s67 = sphi 0, %s53
      %s71 = sphi 0, %s71
      %s73 = sphi 0, %s71
      %s74 = sphi 0, %s73
      %s88 = sphi 0, %s74
      %s94 = sphi 0, %s96
      %s97 = sphi 0, %s94
      %s98 = sphi 0, %s97
      %s114 = sphi 0, %s98
    $region4: #{tpu_custom_call.1} parent=1 // loop_header_branch
      %19 = sbr.rel (%p17) target = $region8
    $region5: #{tpu_custom_call.1} parent=1 // loop_body
      %s21 = ssub.s32 %s16, 1
      %s22 = ssub.s32 %s16, 2
      %s23 = sadd.s32 %s16, 1
      %s24 = ssub.s32 %s16, %s23
      %p25 = scmp.eq.s32.totalorder %s24, 0
      %s27 = sadd.s32 %s26, 1
      %s28 = scalar_select %p25, %s26, %s27
      %p31 = pneg %p25
      %p32 = scmp.eq.s32.totalorder %s16, 1
      %p33 = por %p31, %p32
      %p34 = scmp.ne.s32.totalorder %s26, %s29
      %p35 = scmp.eq.s32.totalorder %s16, 0
      %p36 = por %p34, %p35
      %p37 = scmp.ne.s32.totalorder %s26, %s29
      %p38 = scmp.eq.s32.totalorder %s21, 1
      %p39 = por %p37, %p38
      %p40 = scmp.ne.s32.totalorder %s29, %s30
      %p41 = scmp.eq.s32.totalorder %s21, 0
      %p42 = por %p40, %p41
      %p43 = scmp.ne.s32.totalorder %s29, %s30
      %p44 = scmp.eq.s32.totalorder %s22, 1
      %p45 = por %p43, %p44
      %p47 = scmp.ne.s32.totalorder %s30, %s46
      %p48 = scmp.eq.s32.totalorder %s22, 0
      %p49 = por %p47, %p48
      %s51 = sadd.s32 %s50, 1
      %p54 = scmp.eq.s32.totalorder %s16, 1
      %p55 = scmp.ne.s32.totalorder %s50, %s52
      %p56 = scmp.eq.s32.totalorder %s16, 0
      %p57 = por %p55, %p56
      %p58 = scmp.ne.s32.totalorder %s50, %s52
      %p59 = scmp.eq.s32.totalorder %s21, 1
      %p60 = por %p58, %p59
      %p61 = scmp.ne.s32.totalorder %s52, %s53
      %p62 = scmp.eq.s32.totalorder %s21, 0
      %p63 = por %p61, %p62
      %p64 = scmp.ne.s32.totalorder %s52, %s53
      %p65 = scmp.eq.s32.totalorder %s22, 1
      %p66 = por %p64, %p65
      %p68 = scmp.ne.s32.totalorder %s53, %s67
      %p69 = scmp.eq.s32.totalorder %s22, 0
      %p70 = por %p68, %p69
      %s72 = sadd.s32 %s71, 1
      %p75 = scmp.eq.s32.totalorder %s16, 1
      %p76 = scmp.ne.s32.totalorder %s71, %s73
      %p77 = scmp.eq.s32.totalorder %s16, 0
      %p78 = por %p76, %p77
      %p79 = scmp.ne.s32.totalorder %s71, %s73
      %p80 = scmp.eq.s32.totalorder %s21, 1
      %p81 = por %p79, %p80
      %p82 = scmp.ne.s32.totalorder %s73, %s74
      %p83 = scmp.eq.s32.totalorder %s21, 0
      %p84 = por %p82, %p83
      %p85 = scmp.ne.s32.totalorder %s73, %s74
      %p86 = scmp.eq.s32.totalorder %s22, 1
      %p87 = por %p85, %p86
      %p89 = scmp.ne.s32.totalorder %s74, %s88
      %p90 = scmp.eq.s32.totalorder %s22, 0
      %p91 = por %p89, %p90
      %s92 = ssub.s32 %s16, %s23
      %p93 = scmp.eq.s32.totalorder %s92, 0
      %s95 = sadd.s32 %s94, 1
      %s96 = scalar_select %p93, %s94, %s95
      %p99 = pneg %p93
      %p100 = scmp.eq.s32.totalorder %s16, 1
      %p101 = por %p99, %p100
      %p102 = scmp.ne.s32.totalorder %s94, %s97
      %p103 = scmp.eq.s32.totalorder %s16, 0
      %p104 = por %p102, %p103
      %p105 = scmp.ne.s32.totalorder %s94, %s97
      %p106 = scmp.eq.s32.totalorder %s21, 1
      %p107 = por %p105, %p106
      %p108 = scmp.ne.s32.totalorder %s97, %s98
      %p109 = scmp.eq.s32.totalorder %s21, 0
      %p110 = por %p108, %p109
      %p111 = scmp.ne.s32.totalorder %s97, %s98
      %p112 = scmp.eq.s32.totalorder %s22, 1
      %p113 = por %p111, %p112
      %p115 = scmp.ne.s32.totalorder %s98, %s114
      %p116 = scmp.eq.s32.totalorder %s22, 0
      %p117 = por %p115, %p116
      %p118 = scmp.le.s32.totalorder 1, %s16
      %p119 = scmp.lt.s32.totalorder %s16, 3
      %p120 = pnand %p118, %p119
      %p121 = pneg %p120
      // Predicated region
      $region9: #{tpu_custom_call.1} parent=5 // pred_check
        _
      $region10: #{tpu_custom_call.1} parent=5 // pred_check_branch
        %123 = sbr.rel (%p120) target = $region12
      $region11: #{tpu_custom_call.1} parent=5 // pred_region
        %s124 = ssub.s32 %s16, 1
        // Predicated region
        $region13: #{tpu_custom_call.1} parent=11 // pred_check
          %p125 = pneg %p63
        $region14: #{tpu_custom_call.1} parent=11 // pred_check_branch
          %127 = sbr.rel (%p125) target = $region16
        $region15: #{tpu_custom_call.1} parent=11 // pred_region
          %129 = vsyncadd [#allocation6], 0
          %s130 = sshll.u32 %s1, 4
          %s131 = int_to_ptr.hbm [resolvable:$true] %s130
          %s132 = sshll.u32 [#allocation5], 4
          %s133 = int_to_ptr.vmem [resolvable:$true] %s132
          %138 = dma.hbm_to_vmem [thread:$0]  %s131, 512, %s133, [#allocation6], 128, 128, 8
        $region16: #{tpu_custom_call.1} parent=11 // pred_fallthru
          _
        // Predicated region
        $region17: #{tpu_custom_call.1} parent=11 // pred_check
          %p139 = pneg %p84
        $region18: #{tpu_custom_call.1} parent=11 // pred_check_branch
          %141 = sbr.rel (%p139) target = $region20
        $region19: #{tpu_custom_call.1} parent=11 // pred_region
          _
        $region20: #{tpu_custom_call.1} parent=11 // pred_fallthru
          _
      $region12: #{tpu_custom_call.1} parent=5 // pred_fallthru
        _
      %p142 = scmp.lt.s32.totalorder %s16, 2
      // Predicated region
      $region21: #{tpu_custom_call.1} parent=5 // pred_check
        %p143 = pneg %p142
      $region22: #{tpu_custom_call.1} parent=5 // pred_check_branch
        %145 = sbr.rel (%p143) target = $region24
      $region23: #{tpu_custom_call.1} parent=5 // pred_region
        // Predicated region
        $region25: #{tpu_custom_call.1} parent=23 // pred_check
          %p146 = pneg %p36
        $region26: #{tpu_custom_call.1} parent=23 // pred_check_branch
          %148 = sbr.rel (%p146) target = $region28
        $region27: #{tpu_custom_call.1} parent=23 // pred_region
          %s149 = sand.u32 %s26, 1
          %s150 = scalar_lea.sflag [#allocation3], %s149
          %s151 = sand.u32 %s26, 1
          %s152 = smul.addr %s151, 16
          %s153 = scalar_lea.vmem [#allocation2], %s152
          %s154 = smul.u32 2, %s16
          %s155 = ssub.s32 3, %s154
          %p156 = scmp.lt.s32.totalorder %s155, 2
          %s157 = scalar_select %p156, %s155, 2
          %s158 = smul.u32 8, %s157
          %s159 = ssub.s32 16, %s158
          %s160 = sshll.u32 %s159, 4
          %161 = vsyncadd %s150, %s160
          %p162 = scmp.ne.s32.totalorder 0, %s158
          %s163 = smul.addr %s154, 8
          %s164 = scalar_lea.hbm %s0, %s163
          %s165 = smul.u32 8, %s157
          %s166 = sshll.u32 %s164, 4
          %s167 = int_to_ptr.hbm [resolvable:$true] %s166
          %s168 = sshll.u32 %s153, 4
          %s169 = int_to_ptr.vmem [resolvable:$true] %s168
          %s170 = sshll.u32 %s165, 4
          %174 = dma.hbm_to_vmem [thread:$0]  (%p162), %s167, %s170, %s169, %s150, 128, 128, 8
        $region28: #{tpu_custom_call.1} parent=23 // pred_fallthru
          _
      $region24: #{tpu_custom_call.1} parent=5 // pred_fallthru
        _
      %p175 = scmp.le.s32.totalorder 1, %s16
      %p176 = scmp.lt.s32.totalorder %s16, 3
      %p177 = pnand %p175, %p176
      %p178 = pneg %p177
      // Predicated region
      $region29: #{tpu_custom_call.1} parent=5 // pred_check
        _
      $region30: #{tpu_custom_call.1} parent=5 // pred_check_branch
        %180 = sbr.rel (%p177) target = $region32
      $region31: #{tpu_custom_call.1} parent=5 // pred_region
        %s181 = ssub.s32 %s16, 1
        %s182 = sand.u32 %s29, 1
        %s183 = scalar_lea.sflag [#allocation3], %s182
        %s184 = sand.u32 %s29, 1
        %s185 = smul.addr %s184, 16
        %s186 = scalar_lea.vmem [#allocation2], %s185
        // Predicated region
        $region33: #{tpu_custom_call.1} parent=31 // pred_check
          %p187 = pneg %p42
        $region34: #{tpu_custom_call.1} parent=31 // pred_check_branch
          %189 = sbr.rel (%p187) target = $region36
        $region35: #{tpu_custom_call.1} parent=31 // pred_region
          %191 = dma.done %s183, 256
        $region36: #{tpu_custom_call.1} parent=31 // pred_fallthru
          _
        // Predicated region
        $region37: #{tpu_custom_call.1} parent=31 // pred_check
          %p192 = pneg %p63
        $region38: #{tpu_custom_call.1} parent=31 // pred_check_branch
          %194 = sbr.rel (%p192) target = $region40
        $region39: #{tpu_custom_call.1} parent=31 // pred_region
          %196 = dma.done [#allocation6], 512
        $region40: #{tpu_custom_call.1} parent=31 // pred_fallthru
          _
        %s197 = sand.u32 %s29, 1
        %s198 = scalar_lea.sflag [#allocation3], %s197
        %s199 = sand.u32 %s29, 1
        %s200 = smul.addr %s199, 16
        %s201 = scalar_lea.vmem [#allocation2], %s200
        %p202 = pneg %p42
        %p203 = pneg %p39
        %p204 = pneg %p63
        %p205 = pneg %p60
        %p206 = pneg %p84
        %p207 = pneg %p81
        %p208 = pneg %p110
        %p209 = pneg %p107
        %s210 = sand.u32 %s97, 1
        %s211 = scalar_lea.sflag [#allocation4], %s210
        %s212 = sand.u32 %s97, 1
        %s213 = smul.addr %s212, 16
        %s214 = scalar_lea.vmem [#allocation7], %s213
        %s215 = smul.u32 2, %s21
        %s216 = ssub.s32 3, %s215
        %p217 = scmp.lt.s32.totalorder %s216, 2
        %s218 = scalar_select %p217, %s216, 2
        %s219 = smul.u32 8, %s218
        %s220 = smul.u32 2, %s21
        %s221 = ssub.s32 3, %s220
        %p222 = scmp.lt.s32.totalorder %s221, 2
        %s223 = scalar_select %p222, %s221, 2
        %s224 = smul.u32 8, %s223
        %v225 = vld [vmem:[%s186] sm:$0xff]
        %v226 = vld [vmem:[%s186 + $0x8] sm:$0xff]
        %v227 = vld [vmem:[%s2] sm:$0x1]
        %v229 = vperm.slane %v227, 0
        %v231 = vsub.f32 %v225, %v229
        %v232 = vsub.f32 %v226, %v229
        %v233 = vld [vmem:[#allocation5] sm:$0xff]
        %v234 = vld [vmem:[#allocation5 + $0x8] sm:$0xff]
        %v235 = vld [vmem:[#allocation5 + $0x10] sm:$0xff]
        %v236 = vld [vmem:[#allocation5 + $0x18] sm:$0xff]
        %vm237 = vcmask 261120
        %v239 = vsel %vm237, %v231, 0
        %v242 = vsel %vm237, %v232, 0
        %244 = vmatpush.msra.mxu0 0.0
        %245 = vmatpush.msra.mxu0 0.0
        %246 = vmatpush.msra.mxu0 0.0
        %247 = vmatpush.msra.mxu0 0.0
        %248 = vmatpush.msra.mxu0 0.0
        %249 = vmatpush.msra.mxu0 0.0
        %250 = vmatpush.msra.mxu0 0.0
        %251 = vmatpush.msra.mxu0 0.0
        %252 = vmatpush.msra.mxu0 0.0
        %253 = vmatpush.msra.mxu0 0.0
        %254 = vmatpush.msra.mxu0 0.0
        %255 = vmatpush.msra.mxu0 0.0
        %256 = vmatpush.msra.mxu0 %v236
        %257 = vmatpush.msra.mxu0 %v235
        %258 = vmatpush.msra.mxu0 %v234
        %259 = vmatpush.msra.mxu0 %v233
        %260 = vmatmul.f32.gmra.mxu0 %v239
        %v261 = vpop.f32.mrf.mxu0
        %v262 = vadd.f32 0.0, %v261
        %263 = vmatmul.f32.gmra.mxu0 %v242
        %v264 = vpop.f32.mrf.mxu0
        %v265 = vadd.f32 0.0, %v264
        %266 = vdwg.mxu0
        %267 = vst [vmem:[%s214] sm:$0xff] %v262
        %268 = vst [vmem:[%s214 + $0x8] sm:$0xff] %v265
        %s269 = sand.u32 %s97, 1
        %s270 = scalar_lea.sflag [#allocation4], %s269
        %s271 = sand.u32 %s97, 1
        %s272 = smul.addr %s271, 16
        %s273 = scalar_lea.vmem [#allocation7], %s272
        // Predicated region
        $region41: #{tpu_custom_call.1} parent=31 // pred_check
          %p274 = pneg %p107
        $region42: #{tpu_custom_call.1} parent=31 // pred_check_branch
          %276 = sbr.rel (%p274) target = $region44
        $region43: #{tpu_custom_call.1} parent=31 // pred_region
          %s277 = smul.u32 2, %s21
          %s278 = ssub.s32 3, %s277
          %p279 = scmp.lt.s32.totalorder %s278, 2
          %s280 = scalar_select %p279, %s278, 2
          %s281 = smul.u32 8, %s280
          %s282 = ssub.s32 16, %s281
          %s283 = sshll.u32 %s282, 4
          %284 = vsyncadd %s270, %s283
          %p285 = scmp.ne.s32.totalorder 0, %s281
          %s286 = smul.addr %s277, 8
          %s287 = scalar_lea.hbm %s3, %s286
          %s288 = smul.u32 8, %s280
          %s289 = sshll.u32 %s273, 4
          %s290 = int_to_ptr.vmem [resolvable:$true] %s289
          %s291 = sshll.u32 %s287, 4
          %s292 = int_to_ptr.hbm [resolvable:$true] %s291
          %s293 = sshll.u32 %s288, 4
          %297 = dma.vmem_to_hbm [thread:$0]  (%p285), %s290, %s293, %s292, %s270, 128, 128, 8
        $region44: #{tpu_custom_call.1} parent=31 // pred_fallthru
          _
      $region32: #{tpu_custom_call.1} parent=5 // pred_fallthru
        _
      %p298 = scmp.le.s32.totalorder 2, %s16
      // Predicated region
      $region45: #{tpu_custom_call.1} parent=5 // pred_check
        %p299 = pneg %p298
      $region46: #{tpu_custom_call.1} parent=5 // pred_check_branch
        %301 = sbr.rel (%p299) target = $region48
      $region47: #{tpu_custom_call.1} parent=5 // pred_region
        %s302 = ssub.s32 %s16, 2
        // Predicated region
        $region49: #{tpu_custom_call.1} parent=47 // pred_check
          %p303 = pneg %p113
        $region50: #{tpu_custom_call.1} parent=47 // pred_check_branch
          %305 = sbr.rel (%p303) target = $region52
        $region51: #{tpu_custom_call.1} parent=47 // pred_region
          %s306 = sand.u32 %s98, 1
          %s307 = scalar_lea.sflag [#allocation4], %s306
          %s308 = sand.u32 %s98, 1
          %s309 = smul.addr %s308, 16
          %s310 = scalar_lea.vmem [#allocation7], %s309
          %312 = dma.done %s307, 256
        $region52: #{tpu_custom_call.1} parent=47 // pred_fallthru
          _
      $region48: #{tpu_custom_call.1} parent=5 // pred_fallthru
        _
    $region6: #{tpu_custom_call.1} parent=1 // loop_footer
      %s20 = sadd.s32 1, %s16
    $region7: #{tpu_custom_call.1} parent=1 // loop_footer_branch
      %15 = sbr.rel target = $region3
    $region8: #{tpu_custom_call.1} parent=1 // loop_exit
      _
    %313 = vsyncpa [#allocation3], 1
    %s314 = scalar_lea.sflag [#allocation3], 1
    %315 = vsyncpa %s314, 1
    %316 = vsyncpa [#allocation6], 1
    %317 = vsyncpa [#allocation4], 1
    %s318 = scalar_lea.sflag [#allocation4], 1
    %319 = vsyncpa %s318, 1

</llo_original>
